<compile_context>
chip_gen: v5e
topology: v5e:2x2
jax: 0.10.0
libtpu: 0.0.40
codegen_flags: <defaults>
</compile_context>

<pallas_src>
from typing import Dict, List, Tuple

import jax
import jax.numpy as jnp
from jax.experimental import pallas as pl
from jax.experimental.pallas import tpu as pltpu


def _round_up(x: int, m: int) -> int:
    return ((x + m - 1) // m) * m


def _cdiv(a: int, b: int) -> int:
    return -(-a // b)


def _compose_len1_kernel(tok_ref, tag_ref, wt_ref, wg_ref, b_ref, o_ref):
    # Two MXU matmuls on the un-packed inputs (no HBM slab), f32 accumulation,
    # f32 bias add, cast on store.
    acc = jnp.dot(tok_ref[...], wt_ref[...], preferred_element_type=jnp.float32)
    acc = acc + jnp.dot(tag_ref[...], wg_ref[...],
                        preferred_element_type=jnp.float32)
    o_ref[...] = (acc + b_ref[...]).astype(o_ref.dtype)


def compose_len1(tok, tag, w_tok, w_tag, b, *, block_rows: int = 2048,
                 out_dtype=jnp.float32, min_rows_for_kernel: int = 1024):
    """y = hstack([tok, tag]) @ [W_tok; W_tag] + b, tiled for TPU.

    tok: [n, Dw] (bf16), tag: [n, Dt] (bf16),
    w_tok: [Dw, C] (bf16), w_tag: [Dt, C] (bf16), b: [1, C] (f32)  ->  [n, C].
    """
    n, dw = tok.shape
    dt = tag.shape[1]
    c = w_tok.shape[1]
    assert w_tok.shape[0] == dw and w_tag.shape == (dt, c) and b.shape == (1, c)

    # Small-n fallback: pallas_call launch + one grid step is pure overhead
    # when the real HBM work is sub-microsecond.
    if n < min_rows_for_kernel:
        acc = (jnp.dot(tok, w_tok, preferred_element_type=jnp.float32)
               + jnp.dot(tag, w_tag, preferred_element_type=jnp.float32)
               + b.astype(jnp.float32))
        return acc.astype(out_dtype)

    # Balanced row tiling: caps padding waste at <8 rows per tile.
    num_tiles = max(1, _cdiv(n, block_rows))
    tm = _round_up(max(8, _cdiv(n, num_tiles)), 8)
    n_pad = tm * num_tiles

    if n_pad > n:
        pad = n_pad - n
        tok = jnp.pad(tok, ((0, pad), (0, 0)))
        tag = jnp.pad(tag, ((0, pad), (0, 0)))

    out_bytes = jnp.dtype(out_dtype).itemsize
    cost = pl.CostEstimate(
        flops=2 * n_pad * (dw + dt) * c,
        transcendentals=0,
        bytes_accessed=(n_pad * (tok.dtype.itemsize * dw
                                 + tag.dtype.itemsize * dt
                                 + out_bytes * c)
                        + (dw + dt) * c * w_tok.dtype.itemsize
                        + c * 4),
    )

    y = pl.pallas_call(
        _compose_len1_kernel,
        out_shape=jax.ShapeDtypeStruct((n_pad, c), out_dtype),
        grid=(num_tiles,),
        in_specs=[
            pl.BlockSpec((tm, dw), lambda i: (i, 0)),   # tok rows (double-buffered)
            pl.BlockSpec((tm, dt), lambda i: (i, 0)),   # tag rows (double-buffered)
            pl.BlockSpec((dw, c), lambda i: (0, 0)),    # W_tok: VMEM-resident
            pl.BlockSpec((dt, c), lambda i: (0, 0)),    # W_tag: VMEM-resident
            pl.BlockSpec((1, c), lambda i: (0, 0)),     # bias:  VMEM-resident
        ],
        out_specs=pl.BlockSpec((tm, c), lambda i: (i, 0)),
        compiler_params=pltpu.CompilerParams(
            dimension_semantics=("parallel",),          # shard rows across TCs (v7x)
        ),
        cost_estimate=cost,
    )(tok, tag, w_tok, w_tag, b)

    # Padded output rows contain the bias (acc=0 + b); trim only if we padded.
    return y if n_pad == n else y[:n]


class CompositionalNetworkPallas:
    def __init__(self, output_dim: int, vocab_size: int, tag_size: int,
                 word_emd_dim: int = 200, tag_emb_dim: int = 20,
                 comp_emb_dim: int = 200, n_comp_layers: int = 4,
                 block_rows: int = 2048, min_rows_for_kernel: int = 1024,
                 compute_dtype=jnp.bfloat16, out_dtype=jnp.float32, key=None):
        if key is None:
            key = jax.random.PRNGKey(0)
        self.output_dim = output_dim
        self.word_emd_dim = word_emd_dim
        self.tag_emb_dim = tag_emb_dim
        self.comp_emb_dim = comp_emb_dim
        self.block_rows = block_rows
        self.min_rows_for_kernel = min_rows_for_kernel
        self.compute_dtype = compute_dtype
        self.out_dtype = out_dtype

        k_word, k_tag, *k_layers = jax.random.split(key, 2 + n_comp_layers)
        # Embedding tables stored in bf16 (halves table read + gather traffic);
        # N(0,1) init like torch.nn.Embedding.
        self.word_emb = jax.random.normal(
            k_word, (vocab_size, word_emd_dim), jnp.float32).astype(compute_dtype)
        self.tag_emb = jax.random.normal(
            k_tag, (tag_size, tag_emb_dim), jnp.float32).astype(compute_dtype)

        # Compositional Linear layers keyed by chunk length k, stored f32 as
        # [in_features, out_features] so y = x @ W + b (PyTorch stores [out, in]).
        self.compositional_layers = {}
        for kk in range(1, n_comp_layers + 1):
            in_f = (word_emd_dim + tag_emb_dim) * kk
            kw, kb = jax.random.split(k_layers[kk - 1])
            bound = 1.0 / float(in_f) ** 0.5
            w = jax.random.uniform(kw, (in_f, comp_emb_dim), jnp.float32, -bound, bound)
            b = jax.random.uniform(kb, (1, comp_emb_dim), jnp.float32, -bound, bound)
            self.compositional_layers[kk] = (w, b)

        # Cache the hot-path (length-1) weights once: split into the tok/tag
        # halves and cast to bf16 so no per-forward cast/pad HBM pass remains.
        w1, b1 = self.compositional_layers[1]
        self._w1_tok = w1[:word_emd_dim, :].astype(compute_dtype)
        self._w1_tag = w1[word_emd_dim:, :].astype(compute_dtype)
        self._b1 = b1.astype(jnp.float32)

    # Host-side BIOES chunking (string parsing; no Pallas equivalent).
    def identify_chunks(self, tags, level) -> List[Tuple[int, int]]:
        if level == 1:
            return [(i, 1) for i in range(len(tags))]
        chunks = list()
        current_chunk = {'start_index': -1, 'length': 0}
        for i, tag in enumerate(tags):
            if tag == 'O' or tag.split('-')[0] == 'S':
                if current_chunk['start_index'] != -1:
                    chunks.append((current_chunk['start_index'], current_chunk['length']))
                chunks.append((i, 1))
                current_chunk = {'start_index': -1, 'length': 0}
            elif tag.split('-')[0] == 'E':
                if current_chunk['start_index'] == -1:
                    current_chunk['start_index'] = i
                chunks.append((current_chunk['start_index'], current_chunk['length'] + 1))
                current_chunk = {'start_index': -1, 'length': 0}
            elif tag.split('-')[0] == 'B':
                current_chunk = {'start_index': i, 'length': 1}
            else:
                current_chunk['length'] += 1
        if current_chunk['start_index'] != -1:
            chunks.append((current_chunk['start_index'], current_chunk['length']))
        return chunks

    def forward(self, x: Dict):
        chunks = self.identify_chunks(x['tags'], level=x['level'])

        # The PyTorch reference's Linear_k only type-checks for chunks of length 1
        # (hstack gives last dim Dw+Dt but layer k expects (Dw+Dt)*k), so the only
        # well-defined hot path is the length-1 compositional layer.
        # TODO(synk): length>1 chunks are shape-inconsistent in the PyTorch
        #             reference and are not implemented here.
        assert all(length == 1 for _, length in chunks), "only length-1 chunks supported"
        starts = [s for s, _ in chunks]

        tag_idx = jnp.asarray(x['tag_indices'], jnp.int32)
        if x['use_embedding']:
            tok_idx = jnp.asarray(x['token_indices'], jnp.int32)
            n_tokens = int(tok_idx.shape[0])
        else:
            composed = jnp.vstack(x['composed_vectors'])
            assert composed.shape[1] == self.word_emd_dim, (
                "composed_vectors width must equal word_emd_dim for layer-1 split")
            n_tokens = int(composed.shape[0])

        # Skip the redundant second row-gather when chunk starts are the identity
        # (always the case at level==1); otherwise compose the cheap 1-D index
        # gather instead of gathering [n, Dw] rows twice.
        identity = starts == list(range(n_tokens))
        starts_arr = None if identity else jnp.asarray(starts, jnp.int32)

        if x['use_embedding']:
            gidx = tok_idx if identity else jnp.take(tok_idx, starts_arr)
            tok = jnp.take(self.word_emb, gidx, axis=0)          # bf16 directly
        else:
            tok = composed if identity else jnp.take(composed, starts_arr, axis=0)
            tok = tok.astype(self.compute_dtype)

        tgidx = tag_idx if identity else jnp.take(tag_idx, starts_arr)
        tag = jnp.take(self.tag_emb, tgidx, axis=0)              # bf16 directly

        return compose_len1(tok, tag, self._w1_tok, self._w1_tag, self._b1,
                            block_rows=self.block_rows,
                            out_dtype=self.out_dtype,
                            min_rows_for_kernel=self.min_rows_for_kernel)


if __name__ == "__main__":
    # Small shapes consistent with the module defaults (Dw=200, Dt=20, C=200),
    # with a tiny row tile so the grid actually has multiple steps, and the
    # small-n fallback disabled so the Pallas kernel path is exercised.
    S = 24                    # sequence length
    VOCAB, NTAGS = 16, 6
    DW, DT, C = 200, 20, 200

    net = CompositionalNetworkPallas(
        output_dim=C, vocab_size=VOCAB, tag_size=NTAGS,
        word_emd_dim=DW, tag_emb_dim=DT, comp_emb_dim=C,
        n_comp_layers=4, block_rows=8, min_rows_for_kernel=0,
        key=jax.random.PRNGKey(0))

    key = jax.random.PRNGKey(0)
    k_tok, k_tag = jax.random.split(key)
    token_indices = jax.random.randint(k_tok, (S,), 0, VOCAB)
    tag_indices = jax.random.randint(k_tag, (S,), 0, NTAGS)
    tags = ['O'] * S          # level=1 -> all chunks have length 1 (tags unused)

    x = {
        'tags': tags,
        'level': 1,
        'use_embedding': True,
        'token_indices': token_indices,
        'tag_indices': tag_indices,
    }

    out = net.forward(x)
    out = jax.block_until_ready(out)

    # Plain-JAX reference checks of the fused kernel.
    tok_ref = net.word_emb[token_indices].astype(jnp.float32)   # bf16 table values
    tag_ref = net.tag_emb[tag_indices].astype(jnp.float32)
    w1_f32, b1_f32 = net.compositional_layers[1]
    x_cat = jnp.concatenate([tok_ref, tag_ref], axis=-1)

    # bf16-consistent reference (same rounding the MXU sees, f32 accumulation).
    ref_bf16 = (x_cat @ w1_f32.astype(jnp.bfloat16).astype(jnp.float32)) + b1_f32
    # Full-precision-weights reference (loose tolerance: bf16 rounding only).
    ref_f32 = x_cat @ w1_f32 + b1_f32

    assert out.shape == (S, C), out.shape
    assert jnp.allclose(out, ref_bf16, atol=5e-3, rtol=5e-3)
    assert jnp.allclose(out, ref_f32, atol=5e-2, rtol=5e-2)
    print("KERNEL_OK")
</pallas_src>

<mosaic_0001>
module attributes {stable_mosaic.version = 11 : i64} {
  func.func @_compose_len1_kernel(%arg0: i32, %arg1: memref<8x200xbf16, #tpu.memory_space<vmem>>, %arg2: memref<8x20xbf16, #tpu.memory_space<vmem>>, %arg3: memref<200x200xbf16, #tpu.memory_space<vmem>>, %arg4: memref<20x200xbf16, #tpu.memory_space<vmem>>, %arg5: memref<1x200xf32, #tpu.memory_space<vmem>>, %arg6: memref<8x200xf32, #tpu.memory_space<vmem>>) attributes {dimension_semantics = [#tpu.dimension_semantics<parallel>], iteration_bounds = array<i64: 3>, scalar_prefetch = 0 : i64, scratch_operands = 0 : i64, tpu.core_type = #tpu.core_type<tc>, window_params = [{transform_indices = @transform_0, window_bounds = array<i64: 8, 200>}, {transform_indices = @transform_1, window_bounds = array<i64: 8, 20>}, {pipeline_mode = #tpu.pipeline_mode<synchronous>, transform_indices = @transform_2, window_bounds = array<i64: 200, 200>}, {pipeline_mode = #tpu.pipeline_mode<synchronous>, transform_indices = @transform_3, window_bounds = array<i64: 20, 200>}, {pipeline_mode = #tpu.pipeline_mode<synchronous>, transform_indices = @transform_4, window_bounds = array<i64: 1, 200>}, {transform_indices = @transform_5, window_bounds = array<i64: 8, 200>}]} {
    %c0 = arith.constant 0 : index
    %c0_0 = arith.constant 0 : index
    %0 = vector.load %arg1[%c0, %c0_0] : memref<8x200xbf16, #tpu.memory_space<vmem>>, vector<8x200xbf16>
    %c0_1 = arith.constant 0 : index
    %c0_2 = arith.constant 0 : index
    %1 = vector.load %arg3[%c0_1, %c0_2] : memref<200x200xbf16, #tpu.memory_space<vmem>>, vector<200x200xbf16>
    %cst = arith.constant dense<0.000000e+00> : vector<8x200xf32>
    %2 = tpu.matmul %0, %1, %cst {dimension_numbers = #tpu.dot_dimension_numbers<[1], [0], [0], [1], [0, 0, 1, 1], [], []>} : vector<8x200xbf16>, vector<200x200xbf16>, vector<8x200xf32> -> vector<8x200xf32>
    %c0_3 = arith.constant 0 : index
    %c0_4 = arith.constant 0 : index
    %3 = vector.load %arg2[%c0_3, %c0_4] : memref<8x20xbf16, #tpu.memory_space<vmem>>, vector<8x20xbf16>
    %c0_5 = arith.constant 0 : index
    %c0_6 = arith.constant 0 : index
    %4 = vector.load %arg4[%c0_5, %c0_6] : memref<20x200xbf16, #tpu.memory_space<vmem>>, vector<20x200xbf16>
    %cst_7 = arith.constant dense<0.000000e+00> : vector<8x200xf32>
    %5 = tpu.matmul %3, %4, %cst_7 {dimension_numbers = #tpu.dot_dimension_numbers<[1], [0], [0], [1], [0, 0, 1, 1], [], []>} : vector<8x20xbf16>, vector<20x200xbf16>, vector<8x200xf32> -> vector<8x200xf32>
    %6 = arith.addf %2, %5 : vector<8x200xf32>
    %c0_8 = arith.constant 0 : index
    %c0_9 = arith.constant 0 : index
    %7 = vector.load %arg5[%c0_8, %c0_9] : memref<1x200xf32, #tpu.memory_space<vmem>>, vector<1x200xf32>
    %8 = vector.broadcast %7 : vector<1x200xf32> to vector<8x200xf32>
    %9 = arith.addf %6, %8 : vector<8x200xf32>
    %c0_10 = arith.constant 0 : index
    %c0_11 = arith.constant 0 : index
    %10 = vector.load %arg6[%c0_10, %c0_11] : memref<8x200xf32, #tpu.memory_space<vmem>>, vector<8x200xf32>
    tpu.vector_store %arg6[%c0_10, %c0_11], %9 {strides = array<i32>} : memref<8x200xf32, #tpu.memory_space<vmem>>, vector<8x200xf32>,
    return
  }
  func.func @transform_0(%arg0: i32) -> (i32, i32) {
    %c0_i32 = arith.constant 0 : i32
    %c0_i32_0 = arith.constant 0 : i32
    return %arg0, %c0_i32 : i32, i32
  }
  func.func @transform_1(%arg0: i32) -> (i32, i32) {
    %c0_i32 = arith.constant 0 : i32
    %c0_i32_0 = arith.constant 0 : i32
    return %arg0, %c0_i32 : i32, i32
  }
  func.func @transform_2(%arg0: i32) -> (i32, i32) {
    %c0_i32 = arith.constant 0 : i32
    %c0_i32_0 = arith.constant 0 : i32
    %c0_i32_1 = arith.constant 0 : i32
    return %c0_i32, %c0_i32_0 : i32, i32
  }
  func.func @transform_3(%arg0: i32) -> (i32, i32) {
    %c0_i32 = arith.constant 0 : i32
    %c0_i32_0 = arith.constant 0 : i32
    %c0_i32_1 = arith.constant 0 : i32
    return %c0_i32, %c0_i32_0 : i32, i32
  }
  func.func @transform_4(%arg0: i32) -> (i32, i32) {
    %c0_i32 = arith.constant 0 : i32
    %c0_i32_0 = arith.constant 0 : i32
    %c0_i32_1 = arith.constant 0 : i32
    return %c0_i32, %c0_i32_0 : i32, i32
  }
  func.func @transform_5(%arg0: i32) -> (i32, i32) {
    %c0_i32 = arith.constant 0 : i32
    %c0_i32_0 = arith.constant 0 : i32
    return %arg0, %c0_i32 : i32, i32
  }
}

</mosaic_0001>

<llo_original>
// kernel: tpu_custom_call.1
$region0: #{tpu_custom_call.1}
  #allocation0 [shape = 'u32[]', space=smem, size = 0x4, offset = 0x4, fixed_abs, tag = 'smem constant byte address 0x4 - core index']
  #allocation1 [shape = 'u32[72,128]{1,0:T(1,128)}', space=vmem, size = 0x9000, scoped, tag = 'internal scratch']
  %s0 = inlined_call_operand.hbm [shape: bf16[24,200], index: 0, kind: input, shape index: {}]
  %s1 = inlined_call_operand.hbm [shape: bf16[24,20], index: 1, kind: input, shape index: {}]
  %s2 = inlined_call_operand.hbm [shape: bf16[200,200], index: 2, kind: input, shape index: {}]
  %s3 = inlined_call_operand.hbm [shape: bf16[20,200], index: 3, kind: input, shape index: {}]
  %s4 = inlined_call_operand.vmem [shape: f32[1,200], index: 4, kind: input, shape index: {}]
  %s5 = inlined_call_operand.hbm [shape: f32[24,200], index: 5, kind: output, shape index: {}]
  %s6 = sld [smem:[#allocation0]]
  $region69: #{tpu_custom_call.1} parent=0
    _
  %s8 = ssub.s32 1, %s6
  %s9 = scalar_select 0, %s8, %s6
  $region1: #{tpu_custom_call.1} parent=0
    #allocation2 [shape = 'u8[8192]{0}', space=vmem, size = 0x2000, scoped, tag = 'input window, operand 0']
    #allocation3 [shape = 's32[2]{0}', space=sflag, size = 0x8, scoped, tag = 'scoped memory for tpu_custom_call.1']
    #allocation4 [shape = 's32[2]{0}', space=sflag, size = 0x8, scoped, tag = 'scoped memory for tpu_custom_call.1']
    #allocation5 [shape = 'u8[4096]{0}', space=vmem, size = 0x1000, scoped, tag = 'input window, operand 1']
    #allocation6 [shape = 's32[2]{0}', space=sflag, size = 0x8, scoped, tag = 'scoped memory for tpu_custom_call.1']
    #allocation7 [shape = 'u8[102400]{0}', space=vmem, size = 0x19000, scoped, tag = 'input window, operand 2, single buffered']
    #allocation8 [shape = 'u8[12288]{0}', space=vmem, size = 0x3000, scoped, tag = 'input window, operand 3, single buffered']
    #allocation9 [shape = 's32[1]{0}', space=sflag, size = 0x4, scoped, tag = 'scoped memory for tpu_custom_call.1']
    #allocation10 [shape = 'u8[16384]{0}', space=vmem, size = 0x4000, scoped, tag = 'output window, operand 0']
    %10 = vsyncpa [#allocation3], 0
    %s11 = scalar_lea.sflag [#allocation3], 1
    %12 = vsyncpa %s11, 0
    %13 = vsyncpa [#allocation6], 0
    %s14 = scalar_lea.sflag [#allocation6], 1
    %15 = vsyncpa %s14, 0
    %16 = vsyncpa [#allocation9], 0
    %17 = vsyncpa [#allocation4], 0
    %s18 = scalar_lea.sflag [#allocation4], 1
    %19 = vsyncpa %s18, 0
    loop: start=0, step=1, limit=5
    $region2: #{tpu_custom_call.1} parent=1 // loop_pre_header
      _
    $region3: #{tpu_custom_call.1} parent=1 // loop_header
      %s21 = sphi 0, %s25
      %p22 = scmp.ge.s32.totalorder %s21, 5
      %s31 = sphi 0, %s33
      %s34 = sphi 0, %s31
      %s35 = sphi 0, %s34
      %s51 = sphi 0, %s35
      %s57 = sphi 0, %s59
      %s60 = sphi 0, %s57
      %s61 = sphi 0, %s60
      %s77 = sphi 0, %s61
      %s81 = sphi 0, %s81
      %s83 = sphi 0, %s81
      %s84 = sphi 0, %s83
      %s98 = sphi 0, %s84
      %s102 = sphi 0, %s102
      %s104 = sphi 0, %s102
      %s105 = sphi 0, %s104
      %s119 = sphi 0, %s105
      %s123 = sphi 0, %s123
      %s125 = sphi 0, %s123
      %s126 = sphi 0, %s125
      %s140 = sphi 0, %s126
      %s146 = sphi 0, %s148
      %s149 = sphi 0, %s146
      %s150 = sphi 0, %s149
      %s166 = sphi 0, %s150
    $region4: #{tpu_custom_call.1} parent=1 // loop_header_branch
      %24 = sbr.rel (%p22) target = $region8
    $region5: #{tpu_custom_call.1} parent=1 // loop_body
      %s26 = ssub.s32 %s21, 1
      %s27 = ssub.s32 %s21, 2
      %s28 = sadd.s32 %s21, 1
      %s29 = ssub.s32 %s21, %s28
      %p30 = scmp.eq.s32.totalorder %s29, 0
      %s32 = sadd.s32 %s31, 1
      %s33 = scalar_select %p30, %s31, %s32
      %p36 = pneg %p30
      %p37 = scmp.eq.s32.totalorder %s21, 2
      %p38 = por %p36, %p37
      %p39 = scmp.ne.s32.totalorder %s31, %s34
      %p40 = scmp.eq.s32.totalorder %s21, 0
      %p41 = por %p39, %p40
      %p42 = scmp.ne.s32.totalorder %s31, %s34
      %p43 = scmp.eq.s32.totalorder %s26, 2
      %p44 = por %p42, %p43
      %p45 = scmp.ne.s32.totalorder %s34, %s35
      %p46 = scmp.eq.s32.totalorder %s26, 0
      %p47 = por %p45, %p46
      %p48 = scmp.ne.s32.totalorder %s34, %s35
      %p49 = scmp.eq.s32.totalorder %s27, 2
      %p50 = por %p48, %p49
      %p52 = scmp.ne.s32.totalorder %s35, %s51
      %p53 = scmp.eq.s32.totalorder %s27, 0
      %p54 = por %p52, %p53
      %s55 = ssub.s32 %s21, %s28
      %p56 = scmp.eq.s32.totalorder %s55, 0
      %s58 = sadd.s32 %s57, 1
      %s59 = scalar_select %p56, %s57, %s58
      %p62 = pneg %p56
      %p63 = scmp.eq.s32.totalorder %s21, 2
      %p64 = por %p62, %p63
      %p65 = scmp.ne.s32.totalorder %s57, %s60
      %p66 = scmp.eq.s32.totalorder %s21, 0
      %p67 = por %p65, %p66
      %p68 = scmp.ne.s32.totalorder %s57, %s60
      %p69 = scmp.eq.s32.totalorder %s26, 2
      %p70 = por %p68, %p69
      %p71 = scmp.ne.s32.totalorder %s60, %s61
      %p72 = scmp.eq.s32.totalorder %s26, 0
      %p73 = por %p71, %p72
      %p74 = scmp.ne.s32.totalorder %s60, %s61
      %p75 = scmp.eq.s32.totalorder %s27, 2
      %p76 = por %p74, %p75
      %p78 = scmp.ne.s32.totalorder %s61, %s77
      %p79 = scmp.eq.s32.totalorder %s27, 0
      %p80 = por %p78, %p79
      %s82 = sadd.s32 %s81, 1
      %p85 = scmp.eq.s32.totalorder %s21, 2
      %p86 = scmp.ne.s32.totalorder %s81, %s83
      %p87 = scmp.eq.s32.totalorder %s21, 0
      %p88 = por %p86, %p87
      %p89 = scmp.ne.s32.totalorder %s81, %s83
      %p90 = scmp.eq.s32.totalorder %s26, 2
      %p91 = por %p89, %p90
      %p92 = scmp.ne.s32.totalorder %s83, %s84
      %p93 = scmp.eq.s32.totalorder %s26, 0
      %p94 = por %p92, %p93
      %p95 = scmp.ne.s32.totalorder %s83, %s84
      %p96 = scmp.eq.s32.totalorder %s27, 2
      %p97 = por %p95, %p96
      %p99 = scmp.ne.s32.totalorder %s84, %s98
      %p100 = scmp.eq.s32.totalorder %s27, 0
      %p101 = por %p99, %p100
      %s103 = sadd.s32 %s102, 1
      %p106 = scmp.eq.s32.totalorder %s21, 2
      %p107 = scmp.ne.s32.totalorder %s102, %s104
      %p108 = scmp.eq.s32.totalorder %s21, 0
      %p109 = por %p107, %p108
      %p110 = scmp.ne.s32.totalorder %s102, %s104
      %p111 = scmp.eq.s32.totalorder %s26, 2
      %p112 = por %p110, %p111
      %p113 = scmp.ne.s32.totalorder %s104, %s105
      %p114 = scmp.eq.s32.totalorder %s26, 0
      %p115 = por %p113, %p114
      %p116 = scmp.ne.s32.totalorder %s104, %s105
      %p117 = scmp.eq.s32.totalorder %s27, 2
      %p118 = por %p116, %p117
      %p120 = scmp.ne.s32.totalorder %s105, %s119
      %p121 = scmp.eq.s32.totalorder %s27, 0
      %p122 = por %p120, %p121
      %s124 = sadd.s32 %s123, 1
      %p127 = scmp.eq.s32.totalorder %s21, 2
      %p128 = scmp.ne.s32.totalorder %s123, %s125
      %p129 = scmp.eq.s32.totalorder %s21, 0
      %p130 = por %p128, %p129
      %p131 = scmp.ne.s32.totalorder %s123, %s125
      %p132 = scmp.eq.s32.totalorder %s26, 2
      %p133 = por %p131, %p132
      %p134 = scmp.ne.s32.totalorder %s125, %s126
      %p135 = scmp.eq.s32.totalorder %s26, 0
      %p136 = por %p134, %p135
      %p137 = scmp.ne.s32.totalorder %s125, %s126
      %p138 = scmp.eq.s32.totalorder %s27, 2
      %p139 = por %p137, %p138
      %p141 = scmp.ne.s32.totalorder %s126, %s140
      %p142 = scmp.eq.s32.totalorder %s27, 0
      %p143 = por %p141, %p142
      %s144 = ssub.s32 %s21, %s28
      %p145 = scmp.eq.s32.totalorder %s144, 0
      %s147 = sadd.s32 %s146, 1
      %s148 = scalar_select %p145, %s146, %s147
      %p151 = pneg %p145
      %p152 = scmp.eq.s32.totalorder %s21, 2
      %p153 = por %p151, %p152
      %p154 = scmp.ne.s32.totalorder %s146, %s149
      %p155 = scmp.eq.s32.totalorder %s21, 0
      %p156 = por %p154, %p155
      %p157 = scmp.ne.s32.totalorder %s146, %s149
      %p158 = scmp.eq.s32.totalorder %s26, 2
      %p159 = por %p157, %p158
      %p160 = scmp.ne.s32.totalorder %s149, %s150
      %p161 = scmp.eq.s32.totalorder %s26, 0
      %p162 = por %p160, %p161
      %p163 = scmp.ne.s32.totalorder %s149, %s150
      %p164 = scmp.eq.s32.totalorder %s27, 2
      %p165 = por %p163, %p164
      %p167 = scmp.ne.s32.totalorder %s150, %s166
      %p168 = scmp.eq.s32.totalorder %s27, 0
      %p169 = por %p167, %p168
      %p170 = scmp.le.s32.totalorder 1, %s21
      %p171 = scmp.lt.s32.totalorder %s21, 4
      %p172 = pnand %p170, %p171
      %p173 = pneg %p172
      // Predicated region
      $region9: #{tpu_custom_call.1} parent=5 // pred_check
        _
      $region10: #{tpu_custom_call.1} parent=5 // pred_check_branch
        %175 = sbr.rel (%p172) target = $region12
      $region11: #{tpu_custom_call.1} parent=5 // pred_region
        %s176 = ssub.s32 %s21, 1
        // Predicated region
        $region13: #{tpu_custom_call.1} parent=11 // pred_check
          %p177 = pneg %p94
        $region14: #{tpu_custom_call.1} parent=11 // pred_check_branch
          %179 = sbr.rel (%p177) target = $region16
        $region15: #{tpu_custom_call.1} parent=11 // pred_region
          %181 = vsyncadd [#allocation6], 0
          %s182 = sshll.u32 %s2, 4
          %s183 = int_to_ptr.hbm [resolvable:$true] %s182
          %s184 = sshll.u32 [#allocation7], 4
          %s185 = int_to_ptr.vmem [resolvable:$true] %s184
          %190 = dma.hbm_to_vmem [thread:$0]  %s183, 3200, %s185, [#allocation6], 128, 128, 8
        $region16: #{tpu_custom_call.1} parent=11 // pred_fallthru
          _
        // Predicated region
        $region17: #{tpu_custom_call.1} parent=11 // pred_check
          %p191 = pneg %p115
        $region18: #{tpu_custom_call.1} parent=11 // pred_check_branch
          %193 = sbr.rel (%p191) target = $region20
        $region19: #{tpu_custom_call.1} parent=11 // pred_region
          %195 = vsyncadd [#allocation9], 0
          %s196 = sshll.u32 %s3, 4
          %s197 = int_to_ptr.hbm [resolvable:$true] %s196
          %s198 = sshll.u32 [#allocation8], 4
          %s199 = int_to_ptr.vmem [resolvable:$true] %s198
          %204 = dma.hbm_to_vmem [thread:$0]  %s197, 384, %s199, [#allocation9], 128, 128, 8
        $region20: #{tpu_custom_call.1} parent=11 // pred_fallthru
          _
        // Predicated region
        $region21: #{tpu_custom_call.1} parent=11 // pred_check
          %p205 = pneg %p136
        $region22: #{tpu_custom_call.1} parent=11 // pred_check_branch
          %207 = sbr.rel (%p205) target = $region24
        $region23: #{tpu_custom_call.1} parent=11 // pred_region
          _
        $region24: #{tpu_custom_call.1} parent=11 // pred_fallthru
          _
      $region12: #{tpu_custom_call.1} parent=5 // pred_fallthru
        _
      %p208 = scmp.lt.s32.totalorder %s21, 3
      // Predicated region
      $region25: #{tpu_custom_call.1} parent=5 // pred_check
        %p209 = pneg %p208
      $region26: #{tpu_custom_call.1} parent=5 // pred_check_branch
        %211 = sbr.rel (%p209) target = $region28
      $region27: #{tpu_custom_call.1} parent=5 // pred_region
        // Predicated region
        $region29: #{tpu_custom_call.1} parent=27 // pred_check
          %p212 = pneg %p41
        $region30: #{tpu_custom_call.1} parent=27 // pred_check_branch
          %214 = sbr.rel (%p212) target = $region32
        $region31: #{tpu_custom_call.1} parent=27 // pred_region
          %s215 = sand.u32 %s31, 1
          %s216 = scalar_lea.sflag [#allocation3], %s215
          %s217 = sand.u32 %s31, 1
          %s218 = smul.addr %s217, 8
          %s219 = scalar_lea.vmem [#allocation2], %s218
          %221 = vsyncadd %s216, 0
          %s222 = smul.addr %s21, 2
          %s223 = smul.addr %s222, 4
          %s224 = scalar_lea.hbm %s0, %s223
          %s226 = sshll.u32 %s224, 4
          %s227 = int_to_ptr.hbm [resolvable:$true] %s226
          %s228 = sshll.u32 %s219, 4
          %s229 = int_to_ptr.vmem [resolvable:$true] %s228
          %231 = dma.hbm_to_vmem [thread:$0]  %s227, 128, %s229, %s216
        $region32: #{tpu_custom_call.1} parent=27 // pred_fallthru
          _
        // Predicated region
        $region33: #{tpu_custom_call.1} parent=27 // pred_check
          %p232 = pneg %p67
        $region34: #{tpu_custom_call.1} parent=27 // pred_check_branch
          %234 = sbr.rel (%p232) target = $region36
        $region35: #{tpu_custom_call.1} parent=27 // pred_region
          %s235 = sand.u32 %s21, 1
          %s236 = scalar_lea.sflag [#allocation6], %s235
          %s237 = sand.u32 %s57, 1
          %s238 = smul.addr %s237, 4
          %s239 = scalar_lea.vmem [#allocation5], %s238
          %241 = vsyncadd %s236, 0
          %s242 = smul.addr %s21, 4
          %s243 = scalar_lea.hbm %s1, %s242
          %s245 = sshll.u32 %s243, 4
          %s246 = int_to_ptr.hbm [resolvable:$true] %s245
          %s247 = sshll.u32 %s239, 4
          %s248 = int_to_ptr.vmem [resolvable:$true] %s247
          %250 = dma.hbm_to_vmem [thread:$0]  %s246, 64, %s248, %s236
        $region36: #{tpu_custom_call.1} parent=27 // pred_fallthru
          _
      $region28: #{tpu_custom_call.1} parent=5 // pred_fallthru
        _
      %p251 = scmp.le.s32.totalorder 1, %s21
      %p252 = scmp.lt.s32.totalorder %s21, 4
      %p253 = pnand %p251, %p252
      %p254 = pneg %p253
      // Predicated region
      $region37: #{tpu_custom_call.1} parent=5 // pred_check
        _
      $region38: #{tpu_custom_call.1} parent=5 // pred_check_branch
        %256 = sbr.rel (%p253) target = $region40
      $region39: #{tpu_custom_call.1} parent=5 // pred_region
        %s257 = ssub.s32 %s21, 1
        %s258 = sand.u32 %s34, 1
        %s259 = scalar_lea.sflag [#allocation3], %s258
        %s260 = sand.u32 %s34, 1
        %s261 = smul.addr %s260, 8
        %s262 = scalar_lea.vmem [#allocation2], %s261
        // Predicated region
        $region41: #{tpu_custom_call.1} parent=39 // pred_check
          %p263 = pneg %p47
        $region42: #{tpu_custom_call.1} parent=39 // pred_check_branch
          %265 = sbr.rel (%p263) target = $region44
        $region43: #{tpu_custom_call.1} parent=39 // pred_region
          %267 = dma.done %s259, 128
        $region44: #{tpu_custom_call.1} parent=39 // pred_fallthru
          _
        %s268 = sand.u32 %s26, 1
        %s269 = scalar_lea.sflag [#allocation6], %s268
        %s270 = sand.u32 %s60, 1
        %s271 = smul.addr %s270, 4
        %s272 = scalar_lea.vmem [#allocation5], %s271
        // Predicated region
        $region45: #{tpu_custom_call.1} parent=39 // pred_check
          %p273 = pneg %p73
        $region46: #{tpu_custom_call.1} parent=39 // pred_check_branch
          %275 = sbr.rel (%p273) target = $region48
        $region47: #{tpu_custom_call.1} parent=39 // pred_region
          %277 = dma.done %s269, 64
        $region48: #{tpu_custom_call.1} parent=39 // pred_fallthru
          _
        // Predicated region
        $region49: #{tpu_custom_call.1} parent=39 // pred_check
          %p278 = pneg %p94
        $region50: #{tpu_custom_call.1} parent=39 // pred_check_branch
          %280 = sbr.rel (%p278) target = $region52
        $region51: #{tpu_custom_call.1} parent=39 // pred_region
          %282 = dma.done [#allocation6], 3200
        $region52: #{tpu_custom_call.1} parent=39 // pred_fallthru
          _
        // Predicated region
        $region53: #{tpu_custom_call.1} parent=39 // pred_check
          %p283 = pneg %p115
        $region54: #{tpu_custom_call.1} parent=39 // pred_check_branch
          %285 = sbr.rel (%p283) target = $region56
        $region55: #{tpu_custom_call.1} parent=39 // pred_region
          %287 = dma.done [#allocation9], 384
        $region56: #{tpu_custom_call.1} parent=39 // pred_fallthru
          _
        %s288 = sand.u32 %s34, 1
        %s289 = scalar_lea.sflag [#allocation3], %s288
        %s290 = sand.u32 %s34, 1
        %s291 = smul.addr %s290, 8
        %s292 = scalar_lea.vmem [#allocation2], %s291
        %p293 = pneg %p47
        %p294 = pneg %p44
        %s295 = sand.u32 %s26, 1
        %s296 = scalar_lea.sflag [#allocation6], %s295
        %s297 = sand.u32 %s60, 1
        %s298 = smul.addr %s297, 4
        %s299 = scalar_lea.vmem [#allocation5], %s298
        %p300 = pneg %p73
        %p301 = pneg %p70
        %p302 = pneg %p94
        %p303 = pneg %p91
        %p304 = pneg %p115
        %p305 = pneg %p112
        %p306 = pneg %p136
        %p307 = pneg %p133
        %p308 = pneg %p162
        %p309 = pneg %p159
        %s310 = sand.u32 %s149, 1
        %s311 = scalar_lea.sflag [#allocation4], %s310
        %s312 = sand.u32 %s149, 1
        %s313 = smul.addr %s312, 16
        %s314 = scalar_lea.vmem [#allocation10], %s313
        %v316 = vld [vmem:[%s262] sm:$0xff]
        %v317 = vld [vmem:[#allocation7] sm:$0xff]
        %v318 = vld [vmem:[#allocation7 + $0x8] sm:$0xff]
        %v319 = vld [vmem:[#allocation7 + $0x10] sm:$0xff]
        %v320 = vld [vmem:[#allocation7 + $0x18] sm:$0xff]
        %v321 = vld [vmem:[#allocation7 + $0x20] sm:$0xff]
        %v322 = vld [vmem:[#allocation7 + $0x28] sm:$0xff]
        %v323 = vld [vmem:[#allocation7 + $0x30] sm:$0xff]
        %v324 = vld [vmem:[#allocation7 + $0x38] sm:$0xff]
        %v325 = vld [vmem:[#allocation7 + $0x40] sm:$0xff]
        %v326 = vld [vmem:[#allocation7 + $0x48] sm:$0xff]
        %v327 = vld [vmem:[#allocation7 + $0x50] sm:$0xff]
        %v328 = vld [vmem:[#allocation7 + $0x58] sm:$0xff]
        %v329 = vld [vmem:[#allocation7 + $0x60] sm:$0xff]
        %v330 = vld [vmem:[#allocation7 + $0x68] sm:$0xff]
        %v331 = vld [vmem:[#allocation7 + $0x70] sm:$0xff]
        %v332 = vld [vmem:[#allocation7 + $0x78] sm:$0xff]
        %v333 = vld [vmem:[#allocation7 + $0x80] sm:$0xff]
        %v334 = vld [vmem:[#allocation7 + $0x88] sm:$0xff]
        %v335 = vld [vmem:[#allocation7 + $0x90] sm:$0xff]
        %v336 = vld [vmem:[#allocation7 + $0x98] sm:$0xff]
        %v337 = vld [vmem:[#allocation7 + $0xa0] sm:$0xff]
        %v338 = vld [vmem:[#allocation7 + $0xa8] sm:$0xff]
        %v339 = vld [vmem:[#allocation7 + $0xb0] sm:$0xff]
        %v340 = vld [vmem:[#allocation7 + $0xb8] sm:$0xff]
        %v341 = vld [vmem:[#allocation7 + $0xc0] sm:$0xff]
        %v342 = vld [vmem:[%s272] sm:$0xf]
        %v343 = vld [vmem:[#allocation8] sm:$0xff]
        %v344 = vld [vmem:[#allocation8 + $0x8] sm:$0xff]
        %v345 = vld [vmem:[#allocation8 + $0x10] sm:$0x33]
        %v349 = vunpack.c.l.b16 %v343
        %v350 = vunpack.c.h.b16 %v343
        %v351 = vunpack.c.l.b16 %v344
        %v352 = vunpack.c.h.b16 %v344
        %v353 = vunpack.c.l.b16 %v345
        %v354 = vunpack.c.h.b16 %v345
        %v355 = vpack.c.b16 %v351, %v349
        %v356 = vpack.c.b16 %v352, %v350
        %v357 = vpack.c.b16 %v353, %v353
        %v358 = vpack.c.b16 %v354, %v354
        %vm361 = vcmask 162816
        %v363 = vsel %vm361, %v342, 0
        %vm365 = vcmask 1041408
        %v367 = vsel %vm365, %v357, 0
        %v370 = vsel %vm365, %v358, 0
        %372 = vmatpush.bf16.msra.mxu0 0
        %373 = vmatpush.bf16.msra.mxu0 0
        %374 = vmatpush.bf16.msra.mxu0 0
        %375 = vmatpush.bf16.msra.mxu0 0
        %376 = vmatpush.bf16.msra.mxu0 0
        %377 = vmatpush.bf16.msra.mxu0 0
        %378 = vmatpush.bf16.msra.mxu0 %v367
        %379 = vmatpush.bf16.msra.mxu0 %v355
        %380 = vmatmul.bf16.gmra.mxu0 %v363
        %v381 = vpop.f32.mrf.mxu0
        %v382 = vadd.f32 0.0, %v381
        %v383 = vpop.f32.mrf.mxu0
        %384 = vdwg.mxu0
        %385 = vmatpush.bf16.msra.mxu0 0
        %386 = vmatpush.bf16.msra.mxu0 0
        %387 = vmatpush.bf16.msra.mxu0 0
        %388 = vmatpush.bf16.msra.mxu0 0
        %389 = vmatpush.bf16.msra.mxu0 0
        %390 = vmatpush.bf16.msra.mxu0 0
        %391 = vmatpush.bf16.msra.mxu0 %v370
        %392 = vmatpush.bf16.msra.mxu0 %v356
        %393 = vmatmul.bf16.gmra.mxu0 %v363
        %v394 = vpop.f32.mrf.mxu0
        %v395 = vadd.f32 0.0, %v394
        %v396 = vpop.f32.mrf.mxu0
        %397 = vdwg.mxu0
        %v399 = vunpack.c.l.b16 %v316
        %v400 = vunpack.c.h.b16 %v316
        %v401 = vpack.c.b16 %v399, %v399
        %v402 = vpack.c.b16 %v400, %v400
        %v429 = vunpack.c.l.b16 %v317
        %v430 = vunpack.c.h.b16 %v317
        %v431 = vunpack.c.l.b16 %v318
        %v432 = vunpack.c.h.b16 %v318
        %v433 = vunpack.c.l.b16 %v319
        %v434 = vunpack.c.h.b16 %v319
        %v435 = vunpack.c.l.b16 %v320
        %v436 = vunpack.c.h.b16 %v320
        %v437 = vunpack.c.l.b16 %v321
        %v438 = vunpack.c.h.b16 %v321
        %v439 = vunpack.c.l.b16 %v322
        %v440 = vunpack.c.h.b16 %v322
        %v441 = vunpack.c.l.b16 %v323
        %v442 = vunpack.c.h.b16 %v323
        %v443 = vunpack.c.l.b16 %v324
        %v444 = vunpack.c.h.b16 %v324
        %v445 = vunpack.c.l.b16 %v325
        %v446 = vunpack.c.h.b16 %v325
        %v447 = vunpack.c.l.b16 %v326
        %v448 = vunpack.c.h.b16 %v326
        %v449 = vunpack.c.l.b16 %v327
        %v450 = vunpack.c.h.b16 %v327
        %v451 = vunpack.c.l.b16 %v328
        %v452 = vunpack.c.h.b16 %v328
        %v453 = vunpack.c.l.b16 %v329
        %v454 = vunpack.c.h.b16 %v329
        %v455 = vunpack.c.l.b16 %v330
        %v456 = vunpack.c.h.b16 %v330
        %v457 = vunpack.c.l.b16 %v331
        %v458 = vunpack.c.h.b16 %v331
        %v459 = vunpack.c.l.b16 %v332
        %v460 = vunpack.c.h.b16 %v332
        %v461 = vunpack.c.l.b16 %v333
        %v462 = vunpack.c.h.b16 %v333
        %v463 = vunpack.c.l.b16 %v334
        %v464 = vunpack.c.h.b16 %v334
        %v465 = vunpack.c.l.b16 %v335
        %v466 = vunpack.c.h.b16 %v335
        %v467 = vunpack.c.l.b16 %v336
        %v468 = vunpack.c.h.b16 %v336
        %v469 = vunpack.c.l.b16 %v337
        %v470 = vunpack.c.h.b16 %v337
        %v471 = vunpack.c.l.b16 %v338
        %v472 = vunpack.c.h.b16 %v338
        %v473 = vunpack.c.l.b16 %v339
        %v474 = vunpack.c.h.b16 %v339
        %v475 = vunpack.c.l.b16 %v340
        %v476 = vunpack.c.h.b16 %v340
        %v477 = vunpack.c.l.b16 %v341
        %v478 = vunpack.c.h.b16 %v341
        %v479 = vpack.c.b16 %v431, %v429
        %v480 = vpack.c.b16 %v432, %v430
        %v481 = vpack.c.b16 %v435, %v433
        %v482 = vpack.c.b16 %v436, %v434
        %v483 = vpack.c.b16 %v439, %v437
        %v484 = vpack.c.b16 %v440, %v438
        %v485 = vpack.c.b16 %v443, %v441
        %v486 = vpack.c.b16 %v444, %v442
        %v487 = vpack.c.b16 %v447, %v445
        %v488 = vpack.c.b16 %v448, %v446
        %v489 = vpack.c.b16 %v451, %v449
        %v490 = vpack.c.b16 %v452, %v450
        %v491 = vpack.c.b16 %v455, %v453
        %v492 = vpack.c.b16 %v456, %v454
        %v493 = vpack.c.b16 %v459, %v457
        %v494 = vpack.c.b16 %v460, %v458
        %v495 = vpack.c.b16 %v463, %v461
        %v496 = vpack.c.b16 %v464, %v462
        %v497 = vpack.c.b16 %v467, %v465
        %v498 = vpack.c.b16 %v468, %v466
        %v499 = vpack.c.b16 %v471, %v469
        %v500 = vpack.c.b16 %v472, %v470
        %v501 = vpack.c.b16 %v475, %v473
        %v502 = vpack.c.b16 %v476, %v474
        %v503 = vpack.c.b16 %v477, %v477
        %v504 = vpack.c.b16 %v478, %v478
        %vm529 = vcmask 588800
        %v531 = vsel %vm529, %v402, 0
        %vm533 = vcmask 1043456
        %v535 = vsel %vm533, %v503, 0
        %v538 = vsel %vm533, %v504, 0
        %540 = vmatpush.bf16.msra.mxu0 %v493
        %541 = vmatpush.bf16.msra.mxu0 %v491
        %542 = vmatpush.bf16.msra.mxu0 %v489
        %543 = vmatpush.bf16.msra.mxu0 %v487
        %544 = vmatpush.bf16.msra.mxu0 %v485
        %545 = vmatpush.bf16.msra.mxu0 %v483
        %546 = vmatpush.bf16.msra.mxu0 %v481
        %547 = vmatpush.bf16.msra.mxu0 %v479
        %548 = vmatmul.bf16.gmra.mxu0 %v401
        %v549 = vpop.f32.mrf.mxu0
        %v550 = vadd.f32 %v382, %v549
        %v551 = vpop.f32.mrf.mxu0
        %552 = vdwg.mxu0
        %553 = vmatpush.bf16.msra.mxu0 0
        %554 = vmatpush.bf16.msra.mxu0 0
        %555 = vmatpush.bf16.msra.mxu0 0
        %556 = vmatpush.bf16.msra.mxu0 %v535
        %557 = vmatpush.bf16.msra.mxu0 %v501
        %558 = vmatpush.bf16.msra.mxu0 %v499
        %559 = vmatpush.bf16.msra.mxu0 %v497
        %560 = vmatpush.bf16.msra.mxu0 %v495
        %561 = vmatmul.bf16.gmra.mxu0 %v531
        %v562 = vpop.f32.mrf.mxu0
        %v563 = vadd.f32 %v550, %v562
        %v564 = vpop.f32.mrf.mxu0
        %565 = vdwg.mxu0
        %566 = vmatpush.bf16.msra.mxu0 %v494
        %567 = vmatpush.bf16.msra.mxu0 %v492
        %568 = vmatpush.bf16.msra.mxu0 %v490
        %569 = vmatpush.bf16.msra.mxu0 %v488
        %570 = vmatpush.bf16.msra.mxu0 %v486
        %571 = vmatpush.bf16.msra.mxu0 %v484
        %572 = vmatpush.bf16.msra.mxu0 %v482
        %573 = vmatpush.bf16.msra.mxu0 %v480
        %574 = vmatmul.bf16.gmra.mxu0 %v401
        %v575 = vpop.f32.mrf.mxu0
        %v576 = vadd.f32 %v395, %v575
        %v577 = vpop.f32.mrf.mxu0
        %578 = vdwg.mxu0
        %579 = vmatpush.bf16.msra.mxu0 0
        %580 = vmatpush.bf16.msra.mxu0 0
        %581 = vmatpush.bf16.msra.mxu0 0
        %582 = vmatpush.bf16.msra.mxu0 %v538
        %583 = vmatpush.bf16.msra.mxu0 %v502
        %584 = vmatpush.bf16.msra.mxu0 %v500
        %585 = vmatpush.bf16.msra.mxu0 %v498
        %586 = vmatpush.bf16.msra.mxu0 %v496
        %587 = vmatmul.bf16.gmra.mxu0 %v531
        %v588 = vpop.f32.mrf.mxu0
        %v589 = vadd.f32 %v576, %v588
        %v590 = vpop.f32.mrf.mxu0
        %591 = vdwg.mxu0
        %v592 = vld [vmem:[%s4] sm:$0x3]
        %v594 = vperm.slane %v592, 0
        %v595 = vperm.slane %v592, 1
        %v598 = vadd.f32 %v563, %v594
        %v599 = vadd.f32 %v589, %v595
        %600 = vst [vmem:[%s314] sm:$0xff] %v598
        %601 = vst.msk [vmem:[%s314 + $0x8] sm:$0xff] %vm529, %v599
        %s602 = sand.u32 %s149, 1
        %s603 = scalar_lea.sflag [#allocation4], %s602
        %s604 = sand.u32 %s149, 1
        %s605 = smul.addr %s604, 16
        %s606 = scalar_lea.vmem [#allocation10], %s605
        // Predicated region
        $region57: #{tpu_custom_call.1} parent=39 // pred_check
          %p607 = pneg %p159
        $region58: #{tpu_custom_call.1} parent=39 // pred_check_branch
          %609 = sbr.rel (%p607) target = $region60
        $region59: #{tpu_custom_call.1} parent=39 // pred_region
          %611 = vsyncadd %s603, 0
          %s612 = smul.addr %s26, 2
          %s613 = smul.addr %s612, 8
          %s614 = scalar_lea.hbm %s5, %s613
          %s616 = sshll.u32 %s606, 4
          %s617 = int_to_ptr.vmem [resolvable:$true] %s616
          %s618 = sshll.u32 %s614, 4
          %s619 = int_to_ptr.hbm [resolvable:$true] %s618
          %621 = dma.vmem_to_hbm [thread:$0]  %s617, 256, %s619, %s603
        $region60: #{tpu_custom_call.1} parent=39 // pred_fallthru
          _
      $region40: #{tpu_custom_call.1} parent=5 // pred_fallthru
        _
      %p622 = scmp.le.s32.totalorder 2, %s21
      // Predicated region
      $region61: #{tpu_custom_call.1} parent=5 // pred_check
        %p623 = pneg %p622
      $region62: #{tpu_custom_call.1} parent=5 // pred_check_branch
        %625 = sbr.rel (%p623) target = $region64
      $region63: #{tpu_custom_call.1} parent=5 // pred_region
        %s626 = ssub.s32 %s21, 2
        // Predicated region
        $region65: #{tpu_custom_call.1} parent=63 // pred_check
          %p627 = pneg %p165
        $region66: #{tpu_custom_call.1} parent=63 // pred_check_branch
          %629 = sbr.rel (%p627) target = $region68
        $region67: #{tpu_custom_call.1} parent=63 // pred_region
          %s630 = sand.u32 %s150, 1
          %s631 = scalar_lea.sflag [#allocation4], %s630
          %s632 = sand.u32 %s150, 1
          %s633 = smul.addr %s632, 16
          %s634 = scalar_lea.vmem [#allocation10], %s633
          %636 = dma.done %s631, 256
        $region68: #{tpu_custom_call.1} parent=63 // pred_fallthru
          _
      $region64: #{tpu_custom_call.1} parent=5 // pred_fallthru
        _
    $region6: #{tpu_custom_call.1} parent=1 // loop_footer
      %s25 = sadd.s32 1, %s21
    $region7: #{tpu_custom_call.1} parent=1 // loop_footer_branch
      %20 = sbr.rel target = $region3
    $region8: #{tpu_custom_call.1} parent=1 // loop_exit
      _
    %637 = vsyncpa [#allocation3], 1
    %s638 = scalar_lea.sflag [#allocation3], 1
    %639 = vsyncpa %s638, 1
    %640 = vsyncpa [#allocation6], 1
    %s641 = scalar_lea.sflag [#allocation6], 1
    %642 = vsyncpa %s641, 1
    %643 = vsyncpa [#allocation9], 1
    %644 = vsyncpa [#allocation4], 1
    %s645 = scalar_lea.sflag [#allocation4], 1
    %646 = vsyncpa %s645, 1

</llo_original>
